<compile_context>
chip_gen: v5e
topology: v5e:2x2
jax: 0.10.0
libtpu: 0.0.40
codegen_flags: <defaults>
</compile_context>

<pallas_src>
import math

import jax
import jax.numpy as jnp
from jax.experimental import pallas as pl
from jax.experimental.pallas import tpu as pltpu


_LANE = 128                          # vreg lane width
_MAX_TILE_LANES = 2048               # feature-lane tile cap (multiple of 128)
_MAX_BLOCK_BYTES = 8 * 1024 * 1024   # per-block byte target (upper bound)
_TINY_ELEMENTS = 1 << 14             # below this a standalone kernel is overhead
_SPLIT_MIN_BYTES = 1 << 20           # only split a 1x1 grid if input >= 1 MiB


def _sublane_multiple(dtype) -> int:
    # f32 -> 8 rows per vreg, bf16 -> 16, int8/fp8 -> 32.
    return max(8, 32 // jnp.dtype(dtype).itemsize)


def _vmem_limit_bytes() -> int:
    """Generation-aware scoped-VMEM budget (~75% of physical, capped)."""
    try:
        cap = int(pltpu.get_tpu_info().vmem_capacity_bytes)
    except Exception:
        cap = 64 * 1024 * 1024       # conservative default (v7x per-TC VMEM)
    return min((cap * 3) // 4, 96 * 1024 * 1024)


def _scale_kernel(x_ref, s_ref, o_ref):
    # x_ref: (tile_rows, tile_lanes) block of the input
    # s_ref: (1, tile_lanes) scaler row, broadcast over the sublane (row) axis
    # Compute in the output (promoted) dtype to match PyTorch type promotion.
    o_ref[...] = x_ref[...].astype(o_ref.dtype) * s_ref[...].astype(o_ref.dtype)


def _scale_2d(x2d: jax.Array, s_row: jax.Array, out_dtype, *,
              flops: int, bytes_accessed: int,
              donate_input: bool = False) -> jax.Array:
    """out[r, l] = x2d[r, l] * s_row[0, l], tiled over both axes."""
    rows, lanes = x2d.shape
    itemsize = jnp.dtype(x2d.dtype).itemsize
    sub = _sublane_multiple(x2d.dtype)

    vmem_limit = _vmem_limit_bytes()
    block_bytes = min(_MAX_BLOCK_BYTES, max(vmem_limit // 8, 1 << 20))

    # Lane tile: full feature extent when it fits, else a 128-multiple cap.
    tile_l = lanes if lanes <= _MAX_TILE_LANES else _MAX_TILE_LANES

    # Row tile: sized by bytes, rounded down to the sublane packing multiple.
    max_rows = max(sub, (block_bytes // (tile_l * itemsize)) // sub * sub)
    tile_r = rows if rows <= max_rows else max_rows

    n_lane = pl.cdiv(lanes, tile_l)
    n_row = pl.cdiv(rows, tile_r)

    # v7x has two TensorCores: never hand a large input to a 1x1 grid.
    total_bytes = rows * lanes * itemsize
    if n_lane * n_row == 1 and rows >= 2 * sub and total_bytes >= _SPLIT_MIN_BYTES:
        half = -(-rows // 2)
        tile_r = -(-half // sub) * sub
        n_row = pl.cdiv(rows, tile_r)

    extra_kwargs = {}
    if donate_input and x2d.dtype == jnp.dtype(out_dtype):
        extra_kwargs["input_output_aliases"] = {0: 0}

    return pl.pallas_call(
        _scale_kernel,
        out_shape=jax.ShapeDtypeStruct((rows, lanes), out_dtype),
        grid_spec=pl.GridSpec(
            # Lane tiles outermost, row tiles innermost: the scaler's block
            # index (0, j) is constant across the inner loop, so it stays
            # resident in VMEM and is not re-DMA'd every step.
            grid=(n_lane, n_row),
            in_specs=[
                pl.BlockSpec((tile_r, tile_l), lambda j, i: (i, j)),
                pl.BlockSpec((1, tile_l), lambda j, i: (0, j)),
            ],
            out_specs=pl.BlockSpec((tile_r, tile_l), lambda j, i: (i, j)),
        ),
        compiler_params=pltpu.CompilerParams(
            dimension_semantics=("parallel", "parallel"),
            vmem_limit_bytes=vmem_limit,
        ),
        cost_estimate=pl.CostEstimate(
            flops=flops, transcendentals=0, bytes_accessed=bytes_accessed),
        **extra_kwargs,
    )(x2d, s_row)


def diagonal_scaler(x: jax.Array, scaler: jax.Array, *,
                    force_pallas: bool = False,
                    donate_input: bool = False) -> jax.Array:
    """Elementwise per-feature scaling: out[b, f] = x[b, f] * scaler[f]."""
    B, F = x.shape
    assert scaler.shape == (F,)

    out_dtype = jnp.result_type(x.dtype, scaler.dtype)

    if (not force_pallas) and B * F <= _TINY_ELEMENTS:
        # A standalone kernel for ~KiB of work is pure launch overhead.
        return x * scaler[None, :]

    x_item = jnp.dtype(x.dtype).itemsize
    o_item = jnp.dtype(out_dtype).itemsize
    flops = int(B) * int(F)
    bytes_accessed = B * F * (x_item + o_item) + F * jnp.dtype(scaler.dtype).itemsize

    if F < _LANE:
        # Lane-sparse feature count: fold batch rows into lcm(F, 128)-wide
        # rows so every load/store is an unmasked full-width vld/vst. The
        # row-major reshape is layout-preserving (no extra HBM traffic).
        reps = _LANE // math.gcd(F, _LANE)      # lcm(F, 128) / F
        fold_lanes = F * reps                   # lcm(F, 128), multiple of 128
        if B % reps == 0:
            rows = B // reps
            x2d = x.reshape(rows, fold_lanes)
            s_row = jnp.tile(scaler, reps).reshape(1, fold_lanes)
            out2d = _scale_2d(x2d, s_row, out_dtype, flops=flops,
                              bytes_accessed=bytes_accessed,
                              donate_input=donate_input)
            return out2d.reshape(B, F)
        if not force_pallas:
            # Awkward lane-sparse shape: masked partial stores would dominate
            # a standalone kernel; let XLA handle it.
            return x * scaler[None, :]

    # General path: features on the lane axis, tiled over batch and features.
    return _scale_2d(x, scaler.reshape(1, F), out_dtype, flops=flops,
                     bytes_accessed=bytes_accessed, donate_input=donate_input)


if __name__ == "__main__":
    key = jax.random.PRNGKey(0)
    batch, num_features = 8, 32
    scale = 1.0

    x = jax.random.normal(key, (batch, num_features), dtype=jnp.float32)
    # Deterministic parameter init matching DiagonalScaler.__init__:
    # scaler = scale * ones(num_features)
    scaler = scale * jnp.ones((num_features,), dtype=jnp.float32)

    ref = x * scaler[None, :]

    # Exercise the Pallas kernel even at this tiny demo shape.
    out = diagonal_scaler(x, scaler, force_pallas=True)
    out = jax.block_until_ready(out)
    assert out.shape == (batch, num_features)
    assert out.dtype == ref.dtype
    assert jnp.allclose(out, ref, atol=1e-6), "Pallas path mismatch vs reference"

    # Default path (tiny input -> plain JAX fallback) must agree too.
    out_default = jax.block_until_ready(diagonal_scaler(x, scaler))
    assert jnp.allclose(out_default, ref, atol=1e-6), "fallback path mismatch"

    print("KERNEL_OK")
</pallas_src>

<mosaic_0001>
module attributes {stable_mosaic.version = 11 : i64} {
  func.func @_scale_kernel(%arg0: i32, %arg1: i32, %arg2: memref<2x128xf32, #tpu.memory_space<vmem>>, %arg3: memref<1x128xf32, #tpu.memory_space<vmem>>, %arg4: memref<2x128xf32, #tpu.memory_space<vmem>>) attributes {dimension_semantics = [#tpu.dimension_semantics<parallel>, #tpu.dimension_semantics<parallel>], iteration_bounds = array<i64: 1, 1>, scalar_prefetch = 0 : i64, scratch_operands = 0 : i64, tpu.core_type = #tpu.core_type<tc>, window_params = [{transform_indices = @transform_0, window_bounds = array<i64: 2, 128>}, {transform_indices = @transform_1, window_bounds = array<i64: 1, 128>}, {transform_indices = @transform_2, window_bounds = array<i64: 2, 128>}]} {
    %c0 = arith.constant 0 : index
    %c0_0 = arith.constant 0 : index
    %0 = vector.load %arg2[%c0, %c0_0] : memref<2x128xf32, #tpu.memory_space<vmem>>, vector<2x128xf32>
    %c0_1 = arith.constant 0 : index
    %c0_2 = arith.constant 0 : index
    %1 = vector.load %arg3[%c0_1, %c0_2] : memref<1x128xf32, #tpu.memory_space<vmem>>, vector<1x128xf32>
    %2 = vector.broadcast %1 : vector<1x128xf32> to vector<2x128xf32>
    %3 = arith.mulf %0, %2 : vector<2x128xf32>
    %c0_3 = arith.constant 0 : index
    %c0_4 = arith.constant 0 : index
    %4 = vector.load %arg4[%c0_3, %c0_4] : memref<2x128xf32, #tpu.memory_space<vmem>>, vector<2x128xf32>
    tpu.vector_store %arg4[%c0_3, %c0_4], %3 {strides = array<i32>} : memref<2x128xf32, #tpu.memory_space<vmem>>, vector<2x128xf32>,
    return
  }
  func.func @transform_0(%arg0: i32, %arg1: i32) -> (i32, i32) {
    %c0_i32 = arith.constant 0 : i32
    return %arg1, %arg0 : i32, i32
  }
  func.func @transform_1(%arg0: i32, %arg1: i32) -> (i32, i32) {
    %c0_i32 = arith.constant 0 : i32
    %c0_i32_0 = arith.constant 0 : i32
    return %c0_i32, %arg0 : i32, i32
  }
  func.func @transform_2(%arg0: i32, %arg1: i32) -> (i32, i32) {
    %c0_i32 = arith.constant 0 : i32
    return %arg1, %arg0 : i32, i32
  }
}

</mosaic_0001>

<llo_original>
// kernel: tpu_custom_call.1
$region0: #{tpu_custom_call.1}
  #allocation0 [shape = 'u32[]', space=smem, size = 0x4, offset = 0x4, fixed_abs, tag = 'smem constant byte address 0x4 - core index']
  #allocation1 [shape = 'u32[72,128]{1,0:T(1,128)}', space=vmem, size = 0x9000, scoped, tag = 'internal scratch']
  %s0 = inlined_call_operand.hbm [shape: f32[2,128], index: 0, kind: input, shape index: {}]
  %s1 = inlined_call_operand.hbm [shape: f32[1,128], index: 1, kind: input, shape index: {}]
  %s2 = inlined_call_operand.hbm [shape: f32[2,128], index: 2, kind: output, shape index: {}]
  %s3 = sld [smem:[#allocation0]]
  $region26: #{tpu_custom_call.1} parent=0
    _
  %s5 = ssub.s32 1, %s3
  %s6 = scalar_select 0, %s5, %s3
  $region1: #{tpu_custom_call.1} parent=0
    #allocation2 [shape = 'u8[1024]{0}', space=vmem, size = 0x400, scoped, tag = 'input window, operand 0, single buffered']
    #allocation3 [shape = 's32[1]{0}', space=sflag, size = 0x4, scoped, tag = 'scoped memory for tpu_custom_call.1']
    #allocation4 [shape = 's32[1]{0}', space=sflag, size = 0x4, scoped, tag = 'scoped memory for tpu_custom_call.1']
    #allocation5 [shape = 'u8[512]{0}', space=vmem, size = 0x400, scoped, tag = 'input window, operand 1, single buffered']
    #allocation6 [shape = 's32[1]{0}', space=sflag, size = 0x4, scoped, tag = 'scoped memory for tpu_custom_call.1']
    #allocation7 [shape = 'u8[1024]{0}', space=vmem, size = 0x400, scoped, tag = 'output window, operand 0, single buffered']
    %7 = vsyncpa [#allocation3], 0
    %8 = vsyncpa [#allocation6], 0
    %9 = vsyncpa [#allocation4], 0
    // Predicated region
    $region2: #{tpu_custom_call.1} parent=1 // pred_check
      _
    $region3: #{tpu_custom_call.1} parent=1 // pred_check_branch
      %11 = sbr.rel (0) target = $region5
    $region4: #{tpu_custom_call.1} parent=1 // pred_region
      %13 = vsyncadd [#allocation3], 0
      %s15 = sshll.u32 %s0, 4
      %s16 = int_to_ptr.hbm [resolvable:$true] %s15
      %s17 = sshll.u32 [#allocation2], 4
      %s18 = int_to_ptr.vmem [resolvable:$true] %s17
      %20 = dma.hbm_to_vmem [thread:$0]  %s16, 32, %s18, [#allocation3]
    $region5: #{tpu_custom_call.1} parent=1 // pred_fallthru
      _
    // Predicated region
    $region6: #{tpu_custom_call.1} parent=1 // pred_check
      _
    $region7: #{tpu_custom_call.1} parent=1 // pred_check_branch
      %22 = sbr.rel (0) target = $region9
    $region8: #{tpu_custom_call.1} parent=1 // pred_region
      %24 = vsyncadd [#allocation6], 0
      %s26 = sshll.u32 %s1, 4
      %s27 = int_to_ptr.hbm [resolvable:$true] %s26
      %s28 = sshll.u32 [#allocation5], 4
      %s29 = int_to_ptr.vmem [resolvable:$true] %s28
      %31 = dma.hbm_to_vmem [thread:$0]  %s27, 16, %s29, [#allocation6]
    $region9: #{tpu_custom_call.1} parent=1 // pred_fallthru
      _
    // Predicated region
    $region10: #{tpu_custom_call.1} parent=1 // pred_check
      _
    $region11: #{tpu_custom_call.1} parent=1 // pred_check_branch
      %33 = sbr.rel (0) target = $region13
    $region12: #{tpu_custom_call.1} parent=1 // pred_region
      %35 = dma.done [#allocation3], 32
    $region13: #{tpu_custom_call.1} parent=1 // pred_fallthru
      _
    // Predicated region
    $region14: #{tpu_custom_call.1} parent=1 // pred_check
      _
    $region15: #{tpu_custom_call.1} parent=1 // pred_check_branch
      %37 = sbr.rel (0) target = $region17
    $region16: #{tpu_custom_call.1} parent=1 // pred_region
      %39 = dma.done [#allocation6], 16
    $region17: #{tpu_custom_call.1} parent=1 // pred_fallthru
      _
    %v40 = vld [vmem:[#allocation2] sm:$0x3]
    %v41 = vld [vmem:[#allocation5] sm:$0x1]
    %v43 = vperm.slane %v41, 0
    %v45 = vmul.f32 %v40, %v43
    %46 = vst [vmem:[#allocation7] sm:$0x3] %v45
    // Predicated region
    $region18: #{tpu_custom_call.1} parent=1 // pred_check
      _
    $region19: #{tpu_custom_call.1} parent=1 // pred_check_branch
      %48 = sbr.rel (0) target = $region21
    $region20: #{tpu_custom_call.1} parent=1 // pred_region
      %50 = vsyncadd [#allocation4], 0
      %s52 = sshll.u32 [#allocation7], 4
      %s53 = int_to_ptr.vmem [resolvable:$true] %s52
      %s54 = sshll.u32 %s2, 4
      %s55 = int_to_ptr.hbm [resolvable:$true] %s54
      %57 = dma.vmem_to_hbm [thread:$0]  %s53, 32, %s55, [#allocation4]
    $region21: #{tpu_custom_call.1} parent=1 // pred_fallthru
      _
    // Predicated region
    $region22: #{tpu_custom_call.1} parent=1 // pred_check
      _
    $region23: #{tpu_custom_call.1} parent=1 // pred_check_branch
      %59 = sbr.rel (0) target = $region25
    $region24: #{tpu_custom_call.1} parent=1 // pred_region
      %61 = dma.done [#allocation4], 32
    $region25: #{tpu_custom_call.1} parent=1 // pred_fallthru
      _
    %62 = vsyncpa [#allocation3], 1
    %63 = vsyncpa [#allocation6], 1
    %64 = vsyncpa [#allocation4], 1

</llo_original>
